<compile_context>
chip_gen: v6e
topology: v6e:2x2x1
jax: 0.10.0
libtpu: 0.0.40
codegen_flags: <defaults>
</compile_context>

<pallas_src>
import jax
import jax.numpy as jnp
import numpy as np
from jax import lax
from jax.experimental import pallas as pl
from jax.experimental.pallas import tpu as pltpu

EMBED_DIM = 64  # matches QNet(embed_dim=64)
_EPS = 1e-12    # F.normalize default eps


def _qnet_kernel(scal_ref, agg_ref, node_ref, wa_ref, wn_ref, out_ref):
    # scal_ref (SMEM, shape (4,)): [beta2, beta3, noise, bias]
    beta2 = scal_ref[0]
    beta3 = scal_ref[1]
    noise = scal_ref[2]
    bias = scal_ref[3]

    eps2 = jnp.float32(_EPS * _EPS)

    agg = agg_ref[...]     # (T, D)
    node = node_ref[...]   # (T, D)

    # F.normalize(x, p=2, dim=1): x / max(||x||, eps) == x * rsqrt(max(ss, eps^2))
    agg_n = agg * lax.rsqrt(
        jnp.maximum(jnp.sum(agg * agg, axis=1, keepdims=True), eps2))
    node_n = node * lax.rsqrt(
        jnp.maximum(jnp.sum(node * node, axis=1, keepdims=True), eps2))

    h_agg = jnp.maximum(beta2 * agg_n, 0.0)             # ReLU(beta2 * agg_n)
    h_node = jnp.maximum(beta3 * node_n + noise, 0.0)   # ReLU(beta3 * node_n + noise)

    # fc as split multiply-reduce (VPU mul + XLU lane-reduce, no MXU, no concat):
    # relu(cat(a, n)) @ w.T == sum(relu_a * w_a) + sum(relu_n * w_n)
    out_ref[...] = (
        jnp.sum(h_agg * wa_ref[...], axis=1, keepdims=True)
        + jnp.sum(h_node * wn_ref[...], axis=1, keepdims=True)
        + bias)


def qnet_pallas(agg_embed, node_embed, w_agg, w_node, beta2, beta3, noise, bias,
                *, block_rows=512):
    """agg/node: (B, D) f32; w_agg/w_node: (1, D) f32; scalars beta2/beta3/noise/bias."""
    B, D = agg_embed.shape
    scalars = jnp.stack([jnp.asarray(beta2, jnp.float32),
                         jnp.asarray(beta3, jnp.float32),
                         jnp.asarray(noise, jnp.float32),
                         jnp.asarray(bias, jnp.float32)])

    # Row-tile the batch; small batches use a single full-extent block
    # (valid per the "block == full dim" rule). (512,128) f32 per buffer pair
    # stays well under the 32 MiB default scoped VMEM on v7x.
    tile = B if B <= block_rows else block_rows
    pad = (-B) % tile
    if pad:
        agg_embed = jnp.pad(agg_embed, ((0, pad), (0, 0)))
        node_embed = jnp.pad(node_embed, ((0, pad), (0, 0)))
    Bp = B + pad

    grid_spec = pltpu.PrefetchScalarGridSpec(
        num_scalar_prefetch=1,
        grid=(Bp // tile,),
        in_specs=[
            pl.BlockSpec((tile, D), lambda i, s: (i, 0)),   # agg rows
            pl.BlockSpec((tile, D), lambda i, s: (i, 0)),   # node rows
            pl.BlockSpec((1, D), lambda i, s: (0, 0)),      # w_agg (resident)
            pl.BlockSpec((1, D), lambda i, s: (0, 0)),      # w_node (resident)
        ],
        out_specs=pl.BlockSpec((tile, 1), lambda i, s: (i, 0)),
    )
    out = pl.pallas_call(
        _qnet_kernel,
        out_shape=jax.ShapeDtypeStruct((Bp, 1), jnp.float32),
        grid_spec=grid_spec,
        compiler_params=pltpu.CompilerParams(
            dimension_semantics=("parallel",)),
    )(scalars, agg_embed, node_embed, w_agg, w_node)
    return out[:B] if pad else out


def init_qnet_params(key, embed_dim=EMBED_DIM):
    """Deterministic re-creation of QNet.__init__ parameter shapes/inits."""
    k1, k2, k3, k4 = jax.random.split(key, 4)
    in_f = embed_dim * 2
    # xavier_uniform_ for a (1, in_f) Linear weight
    bound = float(np.sqrt(6.0 / (in_f + 1)))
    fc1_v = jax.random.uniform(k1, (1, in_f), jnp.float32, -bound, bound)
    fc2_v = jax.random.uniform(k2, (1, in_f), jnp.float32, -bound, bound)
    # weight_norm: g initialized to ||v|| per output row (dim=0)
    fc1_g = jnp.sqrt(jnp.sum(fc1_v ** 2, axis=1, keepdims=True))
    fc2_g = jnp.sqrt(jnp.sum(fc2_v ** 2, axis=1, keepdims=True))
    # default nn.Linear bias init: U(-1/sqrt(fan_in), 1/sqrt(fan_in))
    bb = float(1.0 / np.sqrt(in_f))
    fc1_b = jax.random.uniform(k3, (1,), jnp.float32, -bb, bb)
    fc2_b = jax.random.uniform(k4, (1,), jnp.float32, -bb, bb)
    return dict(
        embed_dim=embed_dim,
        beta2=jnp.ones((1,), jnp.float32),
        beta3=jnp.ones((1,), jnp.float32),
        # beta1/theta1/theta2/theta3 exist in __init__ but are unused in forward
        fc1_v=fc1_v, fc1_g=fc1_g, fc1_b=fc1_b,
        fc2_v=fc2_v, fc2_g=fc2_g, fc2_b=fc2_b,
    )


def precompute_effective_weights(params):
    """weight_norm effective weight w = g * v / ||v||, computed once per
    parameter update and split into (1, D) agg/node halves for the kernel."""
    D = params["embed_dim"]

    def eff(v, g):
        w = g * v * lax.rsqrt(jnp.sum(v * v, axis=1, keepdims=True))  # (1, 2D)
        return w[:, :D], w[:, D:]

    wa1, wn1 = eff(params["fc1_v"], params["fc1_g"])
    wa2, wn2 = eff(params["fc2_v"], params["fc2_g"])
    return {"critic": (wa1, wn1, params["fc1_b"][0]),
            "actor": (wa2, wn2, params["fc2_b"][0])}


def qnet_forward(params, eff_w, node_embed, agg_embed, role="critic",
                 noise_key=None):
    if role == "critic":
        w_agg, w_node, bias = eff_w["critic"]
        beta2 = params["beta2"][0]
        beta3 = params["beta3"][0]
        if noise_key is None:
            noise_key = jax.random.PRNGKey(1)
        # torch.rand(1) * 1e-10 -> deterministic tiny uniform noise here
        noise = jax.random.uniform(noise_key, (), jnp.float32) * jnp.float32(1e-10)
    else:  # actor
        w_agg, w_node, bias = eff_w["actor"]
        beta2 = jnp.float32(1.0)
        beta3 = jnp.float32(1.0)
        noise = jnp.float32(0.0)
    out = qnet_pallas(agg_embed, node_embed, w_agg, w_node,
                      beta2, beta3, noise, bias)
    return out, noise


def _reference_forward(params, node_embed, agg_embed, role, noise):
    eps = 1e-12
    agg_n = agg_embed / jnp.maximum(
        jnp.linalg.norm(agg_embed, axis=1, keepdims=True), eps)
    node_n = node_embed / jnp.maximum(
        jnp.linalg.norm(node_embed, axis=1, keepdims=True), eps)
    if role == "critic":
        v, g, b = params["fc1_v"], params["fc1_g"], params["fc1_b"]
        sa = params["beta2"][0] * agg_n
        sn = params["beta3"][0] * node_n + noise
    else:
        v, g, b = params["fc2_v"], params["fc2_g"], params["fc2_b"]
        sa, sn = agg_n, node_n
    w = g * v / jnp.sqrt(jnp.sum(v ** 2, axis=1, keepdims=True))
    combined = jnp.concatenate([sa, sn], axis=1)
    return jnp.maximum(combined, 0.0) @ w.T + b


if __name__ == "__main__":
    key = jax.random.PRNGKey(0)
    kp, kn, ka, kn2, ka2 = jax.random.split(key, 5)

    B = 2
    params = init_qnet_params(kp, EMBED_DIM)
    eff_w = precompute_effective_weights(params)
    node_embed = jax.random.normal(kn, (B, EMBED_DIM), jnp.float32)
    agg_embed = jax.random.normal(ka, (B, EMBED_DIM), jnp.float32)

    out_critic, noise_c = qnet_forward(params, eff_w, node_embed, agg_embed,
                                       role="critic")
    out_actor, _ = qnet_forward(params, eff_w, node_embed, agg_embed,
                                role="actor")
    jax.block_until_ready((out_critic, out_actor))

    ref_c = _reference_forward(params, node_embed, agg_embed, "critic", noise_c)
    ref_a = _reference_forward(params, node_embed, agg_embed, "actor", 0.0)
    np.testing.assert_allclose(np.asarray(out_critic), np.asarray(ref_c),
                               rtol=1e-5, atol=1e-5)
    np.testing.assert_allclose(np.asarray(out_actor), np.asarray(ref_a),
                               rtol=1e-5, atol=1e-5)
    assert out_critic.shape == (B, 1) and out_actor.shape == (B, 1)

    # Exercise the batch grid (tiling + padding path) at a modest size.
    Bt = 600
    node_t = jax.random.normal(kn2, (Bt, EMBED_DIM), jnp.float32)
    agg_t = jax.random.normal(ka2, (Bt, EMBED_DIM), jnp.float32)
    w_agg, w_node, bias = eff_w["critic"]
    out_t = qnet_pallas(agg_t, node_t, w_agg, w_node,
                        params["beta2"][0], params["beta3"][0],
                        noise_c, bias, block_rows=256)
    jax.block_until_ready(out_t)
    ref_t = _reference_forward(params, node_t, agg_t, "critic", noise_c)
    np.testing.assert_allclose(np.asarray(out_t), np.asarray(ref_t),
                               rtol=1e-5, atol=1e-5)
    assert out_t.shape == (Bt, 1)

    print("KERNEL_OK")
</pallas_src>

<mosaic_0001>
module attributes {stable_mosaic.version = 11 : i64} {
  func.func @_qnet_kernel(%arg0: i32, %arg1: memref<4xf32, #tpu.memory_space<smem>>, %arg2: memref<2x64xf32, #tpu.memory_space<vmem>>, %arg3: memref<2x64xf32, #tpu.memory_space<vmem>>, %arg4: memref<1x64xf32, #tpu.memory_space<vmem>>, %arg5: memref<1x64xf32, #tpu.memory_space<vmem>>, %arg6: memref<2x1xf32, #tpu.memory_space<vmem>>) attributes {dimension_semantics = [#tpu.dimension_semantics<parallel>], iteration_bounds = array<i64: 1>, scalar_prefetch = 1 : i64, scratch_operands = 0 : i64, tpu.core_type = #tpu.core_type<tc>, window_params = [{transform_indices = @transform_0, window_bounds = array<i64: 2, 64>}, {transform_indices = @transform_1, window_bounds = array<i64: 2, 64>}, {pipeline_mode = #tpu.pipeline_mode<synchronous>, transform_indices = @transform_2, window_bounds = array<i64: 1, 64>}, {pipeline_mode = #tpu.pipeline_mode<synchronous>, transform_indices = @transform_3, window_bounds = array<i64: 1, 64>}, {transform_indices = @transform_4, window_bounds = array<i64: 2, 1>}]} {
    %c0 = arith.constant 0 : index
    %0 = memref.load %arg1[%c0] : memref<4xf32, #tpu.memory_space<smem>>
    %c1 = arith.constant 1 : index
    %1 = memref.load %arg1[%c1] : memref<4xf32, #tpu.memory_space<smem>>
    %c2 = arith.constant 2 : index
    %2 = memref.load %arg1[%c2] : memref<4xf32, #tpu.memory_space<smem>>
    %c3 = arith.constant 3 : index
    %3 = memref.load %arg1[%c3] : memref<4xf32, #tpu.memory_space<smem>>
    %c0_0 = arith.constant 0 : index
    %c0_1 = arith.constant 0 : index
    %4 = vector.load %arg2[%c0_0, %c0_1] : memref<2x64xf32, #tpu.memory_space<vmem>>, vector<2x64xf32>
    %c0_2 = arith.constant 0 : index
    %c0_3 = arith.constant 0 : index
    %5 = vector.load %arg3[%c0_2, %c0_3] : memref<2x64xf32, #tpu.memory_space<vmem>>, vector<2x64xf32>
    %6 = arith.mulf %4, %4 : vector<2x64xf32>
    %cst = arith.constant dense<0.000000e+00> : vector<2xf32>
    %7 = vector.multi_reduction <add>, %6, %cst [1] : vector<2x64xf32> to vector<2xf32>
    %8 = vector.shape_cast %7 : vector<2xf32> to vector<2x1xf32>
    %cst_4 = arith.constant 1.000000e-24 : f32
    %9 = vector.broadcast %cst_4 : f32 to vector<2x1xf32>
    %10 = arith.maximumf %8, %9 : vector<2x1xf32>
    %11 = math.rsqrt %10 : vector<2x1xf32>
    %12 = vector.broadcast %11 : vector<2x1xf32> to vector<2x64xf32>
    %13 = arith.mulf %4, %12 : vector<2x64xf32>
    %14 = arith.mulf %5, %5 : vector<2x64xf32>
    %cst_5 = arith.constant dense<0.000000e+00> : vector<2xf32>
    %15 = vector.multi_reduction <add>, %14, %cst_5 [1] : vector<2x64xf32> to vector<2xf32>
    %16 = vector.shape_cast %15 : vector<2xf32> to vector<2x1xf32>
    %cst_6 = arith.constant 1.000000e-24 : f32
    %17 = vector.broadcast %cst_6 : f32 to vector<2x1xf32>
    %18 = arith.maximumf %16, %17 : vector<2x1xf32>
    %19 = math.rsqrt %18 : vector<2x1xf32>
    %20 = vector.broadcast %19 : vector<2x1xf32> to vector<2x64xf32>
    %21 = arith.mulf %5, %20 : vector<2x64xf32>
    %22 = vector.broadcast %0 : f32 to vector<2x64xf32>
    %23 = arith.mulf %22, %13 : vector<2x64xf32>
    %cst_7 = arith.constant 0.000000e+00 : f32
    %24 = vector.broadcast %cst_7 : f32 to vector<2x64xf32>
    %25 = arith.maximumf %23, %24 : vector<2x64xf32>
    %26 = vector.broadcast %1 : f32 to vector<2x64xf32>
    %27 = arith.mulf %26, %21 : vector<2x64xf32>
    %28 = vector.broadcast %2 : f32 to vector<2x64xf32>
    %29 = arith.addf %27, %28 : vector<2x64xf32>
    %cst_8 = arith.constant 0.000000e+00 : f32
    %30 = vector.broadcast %cst_8 : f32 to vector<2x64xf32>
    %31 = arith.maximumf %29, %30 : vector<2x64xf32>
    %c0_9 = arith.constant 0 : index
    %c0_10 = arith.constant 0 : index
    %32 = vector.load %arg4[%c0_9, %c0_10] : memref<1x64xf32, #tpu.memory_space<vmem>>, vector<1x64xf32>
    %33 = vector.broadcast %32 : vector<1x64xf32> to vector<2x64xf32>
    %34 = arith.mulf %25, %33 : vector<2x64xf32>
    %cst_11 = arith.constant dense<0.000000e+00> : vector<2xf32>
    %35 = vector.multi_reduction <add>, %34, %cst_11 [1] : vector<2x64xf32> to vector<2xf32>
    %36 = vector.shape_cast %35 : vector<2xf32> to vector<2x1xf32>
    %c0_12 = arith.constant 0 : index
    %c0_13 = arith.constant 0 : index
    %37 = vector.load %arg5[%c0_12, %c0_13] : memref<1x64xf32, #tpu.memory_space<vmem>>, vector<1x64xf32>
    %38 = vector.broadcast %37 : vector<1x64xf32> to vector<2x64xf32>
    %39 = arith.mulf %31, %38 : vector<2x64xf32>
    %cst_14 = arith.constant dense<0.000000e+00> : vector<2xf32>
    %40 = vector.multi_reduction <add>, %39, %cst_14 [1] : vector<2x64xf32> to vector<2xf32>
    %41 = vector.shape_cast %40 : vector<2xf32> to vector<2x1xf32>
    %42 = arith.addf %36, %41 : vector<2x1xf32>
    %43 = vector.broadcast %3 : f32 to vector<2x1xf32>
    %44 = arith.addf %42, %43 : vector<2x1xf32>
    %c0_15 = arith.constant 0 : index
    %c0_16 = arith.constant 0 : index
    %45 = vector.load %arg6[%c0_15, %c0_16] : memref<2x1xf32, #tpu.memory_space<vmem>>, vector<2x1xf32>
    tpu.vector_store %arg6[%c0_15, %c0_16], %44 {strides = array<i32>} : memref<2x1xf32, #tpu.memory_space<vmem>>, vector<2x1xf32>,
    return
  }
  func.func @transform_0(%arg0: i32, %arg1: memref<4xf32, #tpu.memory_space<smem>>) -> (i32, i32) {
    %c0_i32 = arith.constant 0 : i32
    %c0_i32_0 = arith.constant 0 : i32
    return %arg0, %c0_i32 : i32, i32
  }
  func.func @transform_1(%arg0: i32, %arg1: memref<4xf32, #tpu.memory_space<smem>>) -> (i32, i32) {
    %c0_i32 = arith.constant 0 : i32
    %c0_i32_0 = arith.constant 0 : i32
    return %arg0, %c0_i32 : i32, i32
  }
  func.func @transform_2(%arg0: i32, %arg1: memref<4xf32, #tpu.memory_space<smem>>) -> (i32, i32) {
    %c0_i32 = arith.constant 0 : i32
    %c0_i32_0 = arith.constant 0 : i32
    %c0_i32_1 = arith.constant 0 : i32
    return %c0_i32, %c0_i32_0 : i32, i32
  }
  func.func @transform_3(%arg0: i32, %arg1: memref<4xf32, #tpu.memory_space<smem>>) -> (i32, i32) {
    %c0_i32 = arith.constant 0 : i32
    %c0_i32_0 = arith.constant 0 : i32
    %c0_i32_1 = arith.constant 0 : i32
    return %c0_i32, %c0_i32_0 : i32, i32
  }
  func.func @transform_4(%arg0: i32, %arg1: memref<4xf32, #tpu.memory_space<smem>>) -> (i32, i32) {
    %c0_i32 = arith.constant 0 : i32
    %c0_i32_0 = arith.constant 0 : i32
    return %arg0, %c0_i32 : i32, i32
  }
}

</mosaic_0001>

<llo_original>
// kernel: tpu_custom_call.1
$region0: #{tpu_custom_call.1}
  #allocation0 [shape = 'u32[]', space=smem, size = 0x4, offset = 0x4, fixed_abs, tag = 'smem constant byte address 0x4 - core index']
  #allocation1 [shape = 'u32[144,128]{1,0:T(1,128)}', space=vmem, size = 0x12000, scoped, tag = 'internal scratch']
  #allocation2 [shape = 's32[1]{0}', space=sflag, size = 0x4, scoped, tag = 'scoped memory for tpu_custom_call.1']
  #allocation3 [shape = 'u8[512]{0}', space=smem, size = 0x200, scoped, tag = 'prefetched SMEM operand 0']
  %s0 = inlined_call_operand.hbm [shape: f32[4], index: 0, kind: input, shape index: {}]
  %s1 = inlined_call_operand.hbm [shape: f32[2,64], index: 1, kind: input, shape index: {}]
  %s2 = inlined_call_operand.vmem [shape: f32[2,64], index: 2, kind: input, shape index: {}]
  %s3 = inlined_call_operand.vmem [shape: f32[1,64], index: 3, kind: input, shape index: {}]
  %s4 = inlined_call_operand.vmem [shape: f32[1,64], index: 4, kind: input, shape index: {}]
  %s5 = inlined_call_operand.vmem [shape: f32[2,1], index: 5, kind: output, shape index: {}]
  %s6 = sld [smem:[#allocation0]]
  $region30: #{tpu_custom_call.1} parent=0
    _
  %s8 = ssub.s32 1, %s6
  %s9 = scalar_select 0, %s8, %s6
  %11 = dma.hbm_to_smem %s0, 16, [#allocation3], [#allocation2]
  %12 = dma.done [#allocation2], 16
  %13 = sfence
  $region1: #{tpu_custom_call.1} parent=0
    #allocation4 [shape = 'u8[1024]{0}', space=vmem, size = 0x400, scoped, tag = 'input window, operand 1, single buffered']
    #allocation5 [shape = 's32[1]{0}', space=sflag, size = 0x4, scoped, tag = 'scoped memory for tpu_custom_call.1']
    %14 = vsyncpa [#allocation5], 0
    // Predicated region
    $region2: #{tpu_custom_call.1} parent=1 // pred_check
      _
    $region3: #{tpu_custom_call.1} parent=1 // pred_check_branch
      %16 = sbr.rel (0) target = $region5
    $region4: #{tpu_custom_call.1} parent=1 // pred_region
      %s18 = ssub.s32 32, 32
      %19 = vsyncadd [#allocation5], %s18
      %s21 = sshll.u32 [#allocation4], 4
      %s22 = int_to_ptr.vmem [resolvable:$true] %s21
      %24 = dma.hbm_to_vmem [thread:$0]  %s1, 32, %s22, [#allocation5]
    $region5: #{tpu_custom_call.1} parent=1 // pred_fallthru
      _
    // Predicated region
    $region6: #{tpu_custom_call.1} parent=1 // pred_check
      _
    $region7: #{tpu_custom_call.1} parent=1 // pred_check_branch
      %26 = sbr.rel (0) target = $region9
    $region8: #{tpu_custom_call.1} parent=1 // pred_region
      _
    $region9: #{tpu_custom_call.1} parent=1 // pred_fallthru
      _
    // Predicated region
    $region10: #{tpu_custom_call.1} parent=1 // pred_check
      _
    $region11: #{tpu_custom_call.1} parent=1 // pred_check_branch
      %28 = sbr.rel (0) target = $region13
    $region12: #{tpu_custom_call.1} parent=1 // pred_region
      _
    $region13: #{tpu_custom_call.1} parent=1 // pred_fallthru
      _
    // Predicated region
    $region14: #{tpu_custom_call.1} parent=1 // pred_check
      _
    $region15: #{tpu_custom_call.1} parent=1 // pred_check_branch
      %30 = sbr.rel (0) target = $region17
    $region16: #{tpu_custom_call.1} parent=1 // pred_region
      _
    $region17: #{tpu_custom_call.1} parent=1 // pred_fallthru
      _
    // Predicated region
    $region18: #{tpu_custom_call.1} parent=1 // pred_check
      _
    $region19: #{tpu_custom_call.1} parent=1 // pred_check_branch
      %32 = sbr.rel (0) target = $region21
    $region20: #{tpu_custom_call.1} parent=1 // pred_region
      %33 = dma.done [#allocation5], 32
    $region21: #{tpu_custom_call.1} parent=1 // pred_fallthru
      _
    %s34 = sld [smem:[#allocation3]]
    %s35 = sld [smem:[#allocation3 + $0x1]]
    %s36 = sld [smem:[#allocation3 + $0x2]]
    %s37 = sld [smem:[#allocation3 + $0x3]]
    %v38 = vld [vmem:[#allocation4] sm:$0x3]
    %v39 = vld [vmem:[%s2] sm:$0x3]
    %v40 = vmul.f32 %v38, %v38
    %vm41 = vcmask 517120
    %v42 = vsel %vm41, %v40, 0.0
    %43 = vadd.xlane.f32.xlu0 %v42
    %v44 = vpop.xlane.xlu0 %43
    %v45 = vmax.f32 %v44, 1e-24
    %v46 = vrsqrt.pop %v45
    %v47 = vmul.f32 %v38, %v46
    %v48 = vmul.f32 %v39, %v39
    %v49 = vsel %vm41, %v48, 0.0
    %50 = vadd.xlane.f32.xlu0 %v49
    %v51 = vpop.xlane.xlu0 %50
    %v52 = vmax.f32 %v51, 1e-24
    %v53 = vrsqrt.pop %v52
    %v54 = vmul.f32 %v39, %v53
    %v55 = vstv %s34
    %v56 = vmul.f32 %v55, %v47
    %v57 = vmax.f32 %v56, 0.0
    %v58 = vstv %s35
    %v59 = vmul.f32 %v58, %v54
    %v60 = vstv %s36
    %v61 = vadd.f32 %v59, %v60
    %v62 = vmax.f32 %v61, 0.0
    %v63 = vld [vmem:[%s3] sm:$0x1]
    %v65 = vlaneseq
    %v66 = vshrl.u32 %v65, 7
    %v67 = vsub.s32 0, %v66
    %v68 = vrot.slane %v63, %v67
    %v70 = vmul.f32 %v57, %v68
    %v71 = vsel %vm41, %v70, 0.0
    %72 = vadd.xlane.f32.xlu0 %v71
    %v73 = vpop.xlane.xlu0 %72
    %v74 = vld [vmem:[%s4] sm:$0x1]
    %v76 = vlaneseq
    %v77 = vshrl.u32 %v76, 7
    %v78 = vsub.s32 0, %v77
    %v79 = vrot.slane %v74, %v78
    %v81 = vmul.f32 %v62, %v79
    %v82 = vsel %vm41, %v81, 0.0
    %83 = vadd.xlane.f32.xlu0 %v82
    %v84 = vpop.xlane.xlu0 %83
    %v85 = vadd.f32 %v73, %v84
    %v86 = vstv %s37
    %v87 = vadd.f32 %v85, %v86
    %vm88 = vcmask 1024
    %89 = vst.msk [vmem:[%s5] sm:$0x3] %vm88, %v87
    // Predicated region
    $region22: #{tpu_custom_call.1} parent=1 // pred_check
      _
    $region23: #{tpu_custom_call.1} parent=1 // pred_check_branch
      %91 = sbr.rel (0) target = $region25
    $region24: #{tpu_custom_call.1} parent=1 // pred_region
      _
    $region25: #{tpu_custom_call.1} parent=1 // pred_fallthru
      _
    // Predicated region
    $region26: #{tpu_custom_call.1} parent=1 // pred_check
      _
    $region27: #{tpu_custom_call.1} parent=1 // pred_check_branch
      %93 = sbr.rel (0) target = $region29
    $region28: #{tpu_custom_call.1} parent=1 // pred_region
      _
    $region29: #{tpu_custom_call.1} parent=1 // pred_fallthru
      _
    %94 = vsyncpa [#allocation5], 1

</llo_original>
